<compile_context>
chip_gen: v5e
topology: v5e:2x2
jax: 0.10.0
libtpu: 0.0.40
codegen_flags: <defaults>
</compile_context>

<pallas_src>
import functools
import math

import jax
import jax.numpy as jnp
import numpy as np
from jax.experimental import pallas as pl
from jax.experimental.pallas import tpu as pltpu


def _make_tracker_kernel(BT: int, P: int, N: int, E: int, H: int, B: int, msg_agg: str):
    """Builds the per-batch-tile kernel. All sizes and msg_agg are static."""
    f32 = jnp.float32
    partial_tiles = (B % BT) != 0  # last grid step carries padded (undefined) rows

    def kernel(idx_ref, fne_ref, w_ref, bias_ref, out_ref):
        # idx_ref : VMEM (BT, P) int32
        # fne_ref : VMEM (BT, N, E)
        # w_ref   : VMEM (E, H)
        # bias_ref: VMEM (1, H)
        # out_ref : VMEM (BT, H)

        # Clamp indices: padded partial tiles carry unspecified values and VMEM
        # reads have no bounds check.
        idx = jnp.clip(idx_ref[...], 0, N - 1)                          # (BT, P)

        fne = fne_ref[...].astype(f32)                                  # (BT, N, E)
        if partial_tiles:
            # Zero out padded batch rows so undefined padding (possibly NaN/Inf)
            # can never contaminate valid rows via 0*NaN in later matmuls.
            gb = (pl.program_id(0) * BT
                  + jax.lax.broadcasted_iota(jnp.int32, (BT, N, E), 0))
            fne = jnp.where(gb < B, fne, f32(0.0))

        # --- embedding gather via one-hot batched matmul (rides the MXU) ---------
        node_ids = jax.lax.broadcasted_iota(jnp.int32, (BT, P, N), 2)
        onehot = (idx[:, :, None] == node_ids).astype(f32)              # (BT, P, N)
        gathered = jnp.einsum("bpn,bne->bpe", onehot, fne,
                              preferred_element_type=f32)               # (BT, P, E)

        # --- Linear + tanh: one dense (BT*P, E) x (E, H) matmul, tanh on EUP ------
        x = gathered.reshape(BT * P, E)
        h = jnp.tanh(
            jnp.dot(x, w_ref[...].astype(f32), preferred_element_type=f32)
            + bias_ref[...].astype(f32))                                # (BT*P, H)

        # --- aggregate over the personal-node axis -------------------------------
        if msg_agg in ("sum", "avg"):
            scale = 1.0 if msg_agg == "sum" else 1.0 / P
            # Block-diagonal reducer (BT, BT*P): row b selects columns [b*P, (b+1)*P).
            row_ids = jax.lax.broadcasted_iota(jnp.int32, (BT, BT * P), 0)
            col_ids = jax.lax.broadcasted_iota(jnp.int32, (BT, BT * P), 1)
            in_group = (col_ids >= row_ids * P) & (col_ids < (row_ids + 1) * P)
            reducer = jnp.where(in_group, f32(scale), f32(0.0))         # (BT, BT*P)
            agg = jnp.dot(reducer, h, preferred_element_type=f32)       # (BT, H)
        elif msg_agg == "max":
            # Unrolled per-batch static slices + sublane reduces (BT <= 8, static).
            parts = [
                jnp.max(h[b * P:(b + 1) * P, :], axis=0, keepdims=True)
                for b in range(BT)
            ]
            agg = jnp.concatenate(parts, axis=0)                        # (BT, H)
        else:
            raise ValueError("Unknown message aggregation method")

        out_ref[...] = agg.astype(out_ref.dtype)

    return kernel


@functools.partial(jax.jit, static_argnames=("msg_agg",))
def manager_state_tracker(
    feasible_personal_info_nodes,  # (B, P)
    workers_decision,              # (B, P, 2)
    known_one_hot,                 # (B, P, F)
    unknown_one_hot,               # (B, P, F)
    known_differ_one_hot,          # (B, P, F)
    total_qa_turn_one_hot,         # (B, F)
    personal_nodes,                # (B, P) int indices into max_node_num
    final_node_embed,              # (B, N, E)
    weight,                        # (E, H)  transfer Linear weight (in-major layout)
    bias,                          # (1, H)  transfer Linear bias
    msg_agg="avg",
):
    B, P = personal_nodes.shape
    _, N, E = final_node_embed.shape
    H = weight.shape[1]

    # Batch tile: whole batch if small, else sublane-dense tiles of 8 rows.
    BT = B if B < 8 else 8
    grid = (pl.cdiv(B, BT),)

    agg_state = pl.pallas_call(
        _make_tracker_kernel(BT, P, N, E, H, B, msg_agg),
        out_shape=jax.ShapeDtypeStruct((B, H), jnp.float32),
        grid=grid,
        in_specs=[
            pl.BlockSpec((BT, P), lambda i: (i, 0)),        # personal_nodes tile
            pl.BlockSpec((BT, N, E), lambda i: (i, 0, 0)),  # node-embedding tile
            pl.BlockSpec((E, H), lambda i: (0, 0)),         # Linear weight (resident)
            pl.BlockSpec((1, H), lambda i: (0, 0)),         # Linear bias (resident)
        ],
        out_specs=pl.BlockSpec((BT, H), lambda i: (i, 0)),
        compiler_params=pltpu.CompilerParams(
            dimension_semantics=("parallel",)),             # independent batch tiles
    )(personal_nodes.astype(jnp.int32), final_node_embed, weight, bias)

    manager_state = jnp.concatenate(
        [
            feasible_personal_info_nodes,
            workers_decision.reshape(B, -1),
            known_one_hot.reshape(B, -1),
            unknown_one_hot.reshape(B, -1),
            known_differ_one_hot.reshape(B, -1),
            total_qa_turn_one_hot,
            agg_state,
        ],
        axis=1,
    )
    return manager_state


def _reference(feasible, workers, known, unknown, known_d, total_qa, p_nodes, fne, W, b, msg_agg):
    """Pure-JAX reference mirroring the PyTorch forward."""
    B, P = p_nodes.shape
    gathered = jnp.take_along_axis(fne, p_nodes[:, :, None], axis=1)        # (B, P, E)
    h = jnp.tanh(jnp.einsum("bpe,eh->bph", gathered, W) + b[None, :, :])    # (B, P, H)
    if msg_agg == "sum":
        agg = jnp.sum(h, axis=1)
    elif msg_agg == "avg":
        agg = jnp.sum(h, axis=1) / P
    else:
        agg = jnp.max(h, axis=1)
    return jnp.concatenate(
        [feasible, workers.reshape(B, -1), known.reshape(B, -1),
         unknown.reshape(B, -1), known_d.reshape(B, -1), total_qa, agg], axis=1)


def _run_case(key, B, P, N, E, F, H, msg_agg):
    ks = jax.random.split(key, 10)

    feasible = jax.random.normal(ks[0], (B, P), jnp.float32)
    workers_decision = jax.random.normal(ks[1], (B, P, 2), jnp.float32)
    known_one_hot = jax.random.normal(ks[2], (B, P, F), jnp.float32)
    unknown_one_hot = jax.random.normal(ks[3], (B, P, F), jnp.float32)
    known_differ_one_hot = jax.random.normal(ks[4], (B, P, F), jnp.float32)
    total_qa_turn_one_hot = jax.random.normal(ks[5], (B, F), jnp.float32)
    personal_nodes = jax.random.randint(ks[6], (B, P), 0, N, jnp.int32)
    final_node_embed = jax.random.normal(ks[7], (B, N, E), jnp.float32)

    # Deterministic Linear(personal_node_emb_size -> manager_agg_size) init
    # (PyTorch-style uniform), stored in (in, out) layout.
    bound = 1.0 / math.sqrt(E)
    weight = jax.random.uniform(ks[8], (E, H), jnp.float32, -bound, bound)
    bias = jax.random.uniform(ks[9], (1, H), jnp.float32, -bound, bound)

    out = manager_state_tracker(
        feasible, workers_decision, known_one_hot, unknown_one_hot,
        known_differ_one_hot, total_qa_turn_one_hot, personal_nodes,
        final_node_embed, weight, bias, msg_agg=msg_agg,
    )
    out = jax.block_until_ready(out)

    expected_width = P + 2 * P + 3 * P * F + F + H
    assert out.shape == (B, expected_width), (out.shape, (B, expected_width))

    ref = _reference(feasible, workers_decision, known_one_hot, unknown_one_hot,
                     known_differ_one_hot, total_qa_turn_one_hot, personal_nodes,
                     final_node_embed, weight, bias, msg_agg)
    np.testing.assert_allclose(np.asarray(out), np.asarray(ref), rtol=1e-3, atol=1e-3)


if __name__ == "__main__":
    base = jax.random.PRNGKey(0)
    k1, k2, k3 = jax.random.split(base, 3)

    # Case 1: small batch, whole batch in one tile, "avg" aggregation.
    _run_case(k1, B=2, P=4, N=8, E=32, F=32, H=32, msg_agg="avg")
    # Case 2: grid of 2 batch tiles with a partial last tile, "sum" aggregation.
    _run_case(k2, B=10, P=4, N=8, E=32, F=32, H=32, msg_agg="sum")
    # Case 3: full 8-row tile, "max" aggregation path.
    _run_case(k3, B=8, P=4, N=8, E=32, F=32, H=32, msg_agg="max")

    print("KERNEL_OK")
</pallas_src>

<mosaic_0001>
module attributes {stable_mosaic.version = 11 : i64} {
  func.func @kernel(%arg0: i32, %arg1: memref<2x4xi32, #tpu.memory_space<vmem>>, %arg2: memref<2x8x32xf32, #tpu.memory_space<vmem>>, %arg3: memref<32x32xf32, #tpu.memory_space<vmem>>, %arg4: memref<1x32xf32, #tpu.memory_space<vmem>>, %arg5: memref<2x32xf32, #tpu.memory_space<vmem>>) attributes {dimension_semantics = [#tpu.dimension_semantics<parallel>], iteration_bounds = array<i64: 1>, scalar_prefetch = 0 : i64, scratch_operands = 0 : i64, tpu.core_type = #tpu.core_type<tc>, window_params = [{transform_indices = @transform_0, window_bounds = array<i64: 2, 4>}, {transform_indices = @transform_1, window_bounds = array<i64: 2, 8, 32>}, {pipeline_mode = #tpu.pipeline_mode<synchronous>, transform_indices = @transform_2, window_bounds = array<i64: 32, 32>}, {pipeline_mode = #tpu.pipeline_mode<synchronous>, transform_indices = @transform_3, window_bounds = array<i64: 1, 32>}, {transform_indices = @transform_4, window_bounds = array<i64: 2, 32>}]} {
    %c0 = arith.constant 0 : index
    %c0_0 = arith.constant 0 : index
    %0 = vector.load %arg1[%c0, %c0_0] : memref<2x4xi32, #tpu.memory_space<vmem>>, vector<2x4xi32>
    %c0_i32 = arith.constant 0 : i32
    %c7_i32 = arith.constant 7 : i32
    %1 = vector.broadcast %c0_i32 : i32 to vector<2x4xi32>
    %2 = arith.maxsi %1, %0 : vector<2x4xi32>
    %3 = vector.broadcast %c7_i32 : i32 to vector<2x4xi32>
    %4 = arith.minsi %3, %2 : vector<2x4xi32>
    %c0_1 = arith.constant 0 : index
    %c0_2 = arith.constant 0 : index
    %c0_3 = arith.constant 0 : index
    %5 = vector.load %arg2[%c0_1, %c0_2, %c0_3] : memref<2x8x32xf32, #tpu.memory_space<vmem>>, vector<2x8x32xf32>
    %6 = tpu.iota {dimensions = array<i32: 2>} : vector<2x4x8xi32>
    %7 = vector.shape_cast %4 : vector<2x4xi32> to vector<2x4x1xi32>
    %8 = vector.broadcast %7 : vector<2x4x1xi32> to vector<2x4x8xi32>
    %9 = arith.cmpi eq, %8, %6 : vector<2x4x8xi32>
    %10 = arith.extui %9 : vector<2x4x8xi1> to vector<2x4x8xi32>
    %11 = arith.sitofp %10 : vector<2x4x8xi32> to vector<2x4x8xf32>
    "tpu.trace_start"() <{level = 10 : i32, message = "bpn,bne->bpe"}> : () -> ()
    %cst = arith.constant dense<0.000000e+00> : vector<2x4x32xf32>
    %12 = tpu.matmul %11, %5, %cst {dimension_numbers = #tpu.dot_dimension_numbers<[2], [1], [1], [2], [0, 0, 0, 1, 1, 2], [0], [0]>} : vector<2x4x8xf32>, vector<2x8x32xf32>, vector<2x4x32xf32> -> vector<2x4x32xf32>
    "tpu.trace_stop"() : () -> ()
    %13 = vector.shape_cast %12 : vector<2x4x32xf32> to vector<8x32xf32>
    %c0_4 = arith.constant 0 : index
    %c0_5 = arith.constant 0 : index
    %14 = vector.load %arg3[%c0_4, %c0_5] : memref<32x32xf32, #tpu.memory_space<vmem>>, vector<32x32xf32>
    %cst_6 = arith.constant dense<0.000000e+00> : vector<8x32xf32>
    %15 = tpu.matmul %13, %14, %cst_6 {dimension_numbers = #tpu.dot_dimension_numbers<[1], [0], [0], [1], [0, 0, 1, 1], [], []>} : vector<8x32xf32>, vector<32x32xf32>, vector<8x32xf32> -> vector<8x32xf32>
    %c0_7 = arith.constant 0 : index
    %c0_8 = arith.constant 0 : index
    %16 = vector.load %arg4[%c0_7, %c0_8] : memref<1x32xf32, #tpu.memory_space<vmem>>, vector<1x32xf32>
    %17 = vector.broadcast %16 : vector<1x32xf32> to vector<8x32xf32>
    %18 = arith.addf %15, %17 : vector<8x32xf32>
    %19 = math.tanh %18 : vector<8x32xf32>
    %20 = tpu.iota {dimensions = array<i32: 0>} : vector<2x8xi32>
    %21 = tpu.iota {dimensions = array<i32: 1>} : vector<2x8xi32>
    %c4_i32 = arith.constant 4 : i32
    %22 = vector.broadcast %c4_i32 : i32 to vector<2x8xi32>
    %23 = arith.muli %20, %22 : vector<2x8xi32>
    %24 = arith.cmpi sge, %21, %23 : vector<2x8xi32>
    %c1_i32 = arith.constant 1 : i32
    %25 = vector.broadcast %c1_i32 : i32 to vector<2x8xi32>
    %26 = arith.addi %20, %25 : vector<2x8xi32>
    %c4_i32_9 = arith.constant 4 : i32
    %27 = vector.broadcast %c4_i32_9 : i32 to vector<2x8xi32>
    %28 = arith.muli %26, %27 : vector<2x8xi32>
    %29 = arith.cmpi slt, %21, %28 : vector<2x8xi32>
    %30 = arith.andi %24, %29 : vector<2x8xi1>
    %cst_10 = arith.constant 2.500000e-01 : f32
    %cst_11 = arith.constant 0.000000e+00 : f32
    %31 = vector.broadcast %cst_10 : f32 to vector<2x8xf32>
    %32 = vector.broadcast %cst_11 : f32 to vector<2x8xf32>
    %33 = arith.select %30, %31, %32 : vector<2x8xi1>, vector<2x8xf32>
    %cst_12 = arith.constant dense<0.000000e+00> : vector<2x32xf32>
    %34 = tpu.matmul %33, %19, %cst_12 {dimension_numbers = #tpu.dot_dimension_numbers<[1], [0], [0], [1], [0, 0, 1, 1], [], []>} : vector<2x8xf32>, vector<8x32xf32>, vector<2x32xf32> -> vector<2x32xf32>
    %c0_13 = arith.constant 0 : index
    %c0_14 = arith.constant 0 : index
    %35 = vector.load %arg5[%c0_13, %c0_14] : memref<2x32xf32, #tpu.memory_space<vmem>>, vector<2x32xf32>
    tpu.vector_store %arg5[%c0_13, %c0_14], %34 {strides = array<i32>} : memref<2x32xf32, #tpu.memory_space<vmem>>, vector<2x32xf32>,
    return
  }
  func.func @transform_0(%arg0: i32) -> (i32, i32) {
    %c0_i32 = arith.constant 0 : i32
    %c0_i32_0 = arith.constant 0 : i32
    return %arg0, %c0_i32 : i32, i32
  }
  func.func @transform_1(%arg0: i32) -> (i32, i32, i32) {
    %c0_i32 = arith.constant 0 : i32
    %c0_i32_0 = arith.constant 0 : i32
    %c0_i32_1 = arith.constant 0 : i32
    return %arg0, %c0_i32, %c0_i32_0 : i32, i32, i32
  }
  func.func @transform_2(%arg0: i32) -> (i32, i32) {
    %c0_i32 = arith.constant 0 : i32
    %c0_i32_0 = arith.constant 0 : i32
    %c0_i32_1 = arith.constant 0 : i32
    return %c0_i32, %c0_i32_0 : i32, i32
  }
  func.func @transform_3(%arg0: i32) -> (i32, i32) {
    %c0_i32 = arith.constant 0 : i32
    %c0_i32_0 = arith.constant 0 : i32
    %c0_i32_1 = arith.constant 0 : i32
    return %c0_i32, %c0_i32_0 : i32, i32
  }
  func.func @transform_4(%arg0: i32) -> (i32, i32) {
    %c0_i32 = arith.constant 0 : i32
    %c0_i32_0 = arith.constant 0 : i32
    return %arg0, %c0_i32 : i32, i32
  }
}

</mosaic_0001>

<llo_original>
// kernel: manager_state_tracker.1
$region0: #{manager_state_tracker.1}
  #allocation0 [shape = 'u32[]', space=smem, size = 0x4, offset = 0x4, fixed_abs, tag = 'smem constant byte address 0x4 - core index']
  #allocation1 [shape = 'u32[72,128]{1,0:T(1,128)}', space=vmem, size = 0x9000, scoped, tag = 'internal scratch']
  %s0 = inlined_call_operand.vmem [shape: s32[2,4], index: 0, kind: input, shape index: {}]
  %s1 = inlined_call_operand.hbm [shape: f32[2,8,32], index: 1, kind: input, shape index: {}]
  %s2 = inlined_call_operand.hbm [shape: f32[32,32], index: 2, kind: input, shape index: {}]
  %s3 = inlined_call_operand.vmem [shape: f32[1,32], index: 3, kind: input, shape index: {}]
  %s4 = inlined_call_operand.vmem [shape: f32[2,32], index: 4, kind: output, shape index: {}]
  %s5 = sld [smem:[#allocation0]]
  $region34: #{manager_state_tracker.1} parent=0
    _
  %s7 = ssub.s32 1, %s5
  %s8 = scalar_select 0, %s7, %s5
  $region1: #{manager_state_tracker.1} parent=0
    #allocation2 [shape = 'u8[8192]{0}', space=vmem, size = 0x2000, scoped, tag = 'input window, operand 1, single buffered']
    #allocation3 [shape = 's32[1]{0}', space=sflag, size = 0x4, scoped, tag = 'scoped memory for manager_state_tracker.1']
    #allocation4 [shape = 'u8[16384]{0}', space=vmem, size = 0x4000, scoped, tag = 'input window, operand 2, single buffered']
    #allocation5 [shape = 's32[1]{0}', space=sflag, size = 0x4, scoped, tag = 'scoped memory for manager_state_tracker.1']
    %9 = vsyncpa [#allocation3], 0
    %10 = vsyncpa [#allocation5], 0
    // Predicated region
    $region2: #{manager_state_tracker.1} parent=1 // pred_check
      _
    $region3: #{manager_state_tracker.1} parent=1 // pred_check_branch
      %12 = sbr.rel (0) target = $region5
    $region4: #{manager_state_tracker.1} parent=1 // pred_region
      _
    $region5: #{manager_state_tracker.1} parent=1 // pred_fallthru
      _
    // Predicated region
    $region6: #{manager_state_tracker.1} parent=1 // pred_check
      _
    $region7: #{manager_state_tracker.1} parent=1 // pred_check_branch
      %14 = sbr.rel (0) target = $region9
    $region8: #{manager_state_tracker.1} parent=1 // pred_region
      %16 = vsyncadd [#allocation3], 0
      %s17 = sshll.u32 %s1, 4
      %s18 = int_to_ptr.hbm [resolvable:$true] %s17
      %s19 = sshll.u32 [#allocation2], 4
      %s20 = int_to_ptr.vmem [resolvable:$true] %s19
      %25 = dma.hbm_to_vmem [thread:$0]  %s18, 256, %s20, [#allocation3], 128, 128, 8
    $region9: #{manager_state_tracker.1} parent=1 // pred_fallthru
      _
    // Predicated region
    $region10: #{manager_state_tracker.1} parent=1 // pred_check
      _
    $region11: #{manager_state_tracker.1} parent=1 // pred_check_branch
      %27 = sbr.rel (0) target = $region13
    $region12: #{manager_state_tracker.1} parent=1 // pred_region
      %29 = vsyncadd [#allocation5], 0
      %s30 = sshll.u32 %s2, 4
      %s31 = int_to_ptr.hbm [resolvable:$true] %s30
      %s32 = sshll.u32 [#allocation4], 4
      %s33 = int_to_ptr.vmem [resolvable:$true] %s32
      %38 = dma.hbm_to_vmem [thread:$0]  %s31, 512, %s33, [#allocation5], 128, 128, 8
    $region13: #{manager_state_tracker.1} parent=1 // pred_fallthru
      _
    // Predicated region
    $region14: #{manager_state_tracker.1} parent=1 // pred_check
      _
    $region15: #{manager_state_tracker.1} parent=1 // pred_check_branch
      %40 = sbr.rel (0) target = $region17
    $region16: #{manager_state_tracker.1} parent=1 // pred_region
      _
    $region17: #{manager_state_tracker.1} parent=1 // pred_fallthru
      _
    // Predicated region
    $region18: #{manager_state_tracker.1} parent=1 // pred_check
      _
    $region19: #{manager_state_tracker.1} parent=1 // pred_check_branch
      %42 = sbr.rel (0) target = $region21
    $region20: #{manager_state_tracker.1} parent=1 // pred_region
      %44 = dma.done [#allocation3], 256
    $region21: #{manager_state_tracker.1} parent=1 // pred_fallthru
      _
    // Predicated region
    $region22: #{manager_state_tracker.1} parent=1 // pred_check
      _
    $region23: #{manager_state_tracker.1} parent=1 // pred_check_branch
      %46 = sbr.rel (0) target = $region25
    $region24: #{manager_state_tracker.1} parent=1 // pred_region
      %48 = dma.done [#allocation5], 512
    $region25: #{manager_state_tracker.1} parent=1 // pred_fallthru
      _
    %v49 = vld [vmem:[%s0] sm:$0x3]
    %vm50 = vcmp.gt.s32.totalorder %v49, 0
    %v51 = vsel %vm50, %v49, 0
    %vm52 = vcmp.lt.s32.totalorder %v51, 7
    %v53 = vsel %vm52, %v51, 7
    %v54 = vld [vmem:[#allocation2] sm:$0xff]
    %v55 = vld [vmem:[#allocation2 + $0x8] sm:$0xff]
    %v56 = vlaneseq
    %v57 = vand.u32 %v56, 127
    %v58 = vperm.slane %v53, 0
    %v59 = vlaneseq
    %v60 = vshrl.u32 %v59, 7
    %62 = vset.pattern.permute.xlu0 %v60
    %63 = vperm.xlu0 %62, %v58
    %v64 = vpop.permute.xlu0 %63
    %v65 = vperm.slane %v53, 1
    %v66 = vlaneseq
    %v67 = vshrl.u32 %v66, 7
    %69 = vset.pattern.permute.xlu0 %v67
    %70 = vperm.xlu0 %69, %v65
    %v71 = vpop.permute.xlu0 %70
    %vm72 = vcmp.eq.s32.totalorder %v64, %v57
    %vm73 = vcmp.eq.s32.totalorder %v71, %v57
    %v74 = vsel %vm72, 1, 0
    %v75 = vsel %vm73, 1, 0
    %v76 = vcvt.s32.f32 %v74
    %v77 = vcvt.s32.f32 %v75
    %vm78 = vcmask 64512
    %v80 = vsel %vm78, %v76, 0
    %82 = vmatpush.msra.mxu0 0.0
    %83 = vmatpush.msra.mxu0 0.0
    %84 = vmatpush.msra.mxu0 0.0
    %85 = vmatpush.msra.mxu0 0.0
    %86 = vmatpush.msra.mxu0 0.0
    %87 = vmatpush.msra.mxu0 0.0
    %88 = vmatpush.msra.mxu0 0.0
    %89 = vmatpush.msra.mxu0 0.0
    %90 = vmatpush.msra.mxu0 0.0
    %91 = vmatpush.msra.mxu0 0.0
    %92 = vmatpush.msra.mxu0 0.0
    %93 = vmatpush.msra.mxu0 0.0
    %94 = vmatpush.msra.mxu0 0.0
    %95 = vmatpush.msra.mxu0 0.0
    %96 = vmatpush.msra.mxu0 0.0
    %97 = vmatpush.msra.mxu0 %v54
    %98 = vmatmul.f32.gmra.mxu0 %v80
    %v99 = vpop.f32.mrf.mxu0
    %v100 = vadd.f32 0.0, %v99
    %101 = vdwg.mxu0
    %v103 = vsel %vm78, %v77, 0
    %105 = vmatpush.msra.mxu0 0.0
    %106 = vmatpush.msra.mxu0 0.0
    %107 = vmatpush.msra.mxu0 0.0
    %108 = vmatpush.msra.mxu0 0.0
    %109 = vmatpush.msra.mxu0 0.0
    %110 = vmatpush.msra.mxu0 0.0
    %111 = vmatpush.msra.mxu0 0.0
    %112 = vmatpush.msra.mxu0 0.0
    %113 = vmatpush.msra.mxu0 0.0
    %114 = vmatpush.msra.mxu0 0.0
    %115 = vmatpush.msra.mxu0 0.0
    %116 = vmatpush.msra.mxu0 0.0
    %117 = vmatpush.msra.mxu0 0.0
    %118 = vmatpush.msra.mxu0 0.0
    %119 = vmatpush.msra.mxu0 0.0
    %120 = vmatpush.msra.mxu0 %v55
    %121 = vmatmul.f32.gmra.mxu0 %v103
    %v122 = vpop.f32.mrf.mxu0
    %v123 = vadd.f32 0.0, %v122
    %124 = vdwg.mxu0
    %v125 = vld [vmem:[#allocation4] sm:$0xff]
    %v126 = vld [vmem:[#allocation4 + $0x8] sm:$0xff]
    %v127 = vld [vmem:[#allocation4 + $0x10] sm:$0xff]
    %v128 = vld [vmem:[#allocation4 + $0x18] sm:$0xff]
    %v129 = vld [vmem:[%s3] sm:$0x1]
    %v131 = vperm.slane %v129, 0
    %135 = vst [vmem:[#allocation1] ss:$2 sm:$0xff] %v100
    %s136 = scalar_lea.vmem [#allocation1], 1
    %137 = vst [vmem:[%s136] ss:$2 sm:$0xff] %v123
    %v138 = vld.sshfl [vmem:[#allocation1] sm:$0xff pattern:$0x75316420]
    %vm139 = vcmask 261120
    %v140 = vsel %vm139, %v138, 0
    %142 = vmatpush.msra.mxu0 0.0
    %143 = vmatpush.msra.mxu0 0.0
    %144 = vmatpush.msra.mxu0 0.0
    %145 = vmatpush.msra.mxu0 0.0
    %146 = vmatpush.msra.mxu0 0.0
    %147 = vmatpush.msra.mxu0 0.0
    %148 = vmatpush.msra.mxu0 0.0
    %149 = vmatpush.msra.mxu0 0.0
    %150 = vmatpush.msra.mxu0 0.0
    %151 = vmatpush.msra.mxu0 0.0
    %152 = vmatpush.msra.mxu0 0.0
    %153 = vmatpush.msra.mxu0 0.0
    %154 = vmatpush.msra.mxu0 %v128
    %155 = vmatpush.msra.mxu0 %v127
    %156 = vmatpush.msra.mxu0 %v126
    %157 = vmatpush.msra.mxu0 %v125
    %158 = vmatmul.f32.gmra.mxu0 %v140
    %v159 = vpop.f32.mrf.mxu0
    %v160 = vadd.f32 %v131, %v159
    %161 = vdwg.mxu0
    %v162 = vtanh.pop %v160
    %v163 = vlaneseq
    %v164 = vshrl.u32 %v163, 7
    %v165 = vmul.u32 %v164, 4
    %vm166 = vcmp.ge.s32.totalorder %v57, %v165
    %v167 = vadd.s32 %v164, 1
    %v168 = vmul.u32 %v167, 4
    %vm169 = vcmp.lt.s32.totalorder %v57, %v168
    %vm170 = vmand %vm166, %vm169
    %v171 = vsel %vm170, 0.25, 0.0
    %v173 = vsel %vm78, %v171, 0
    %175 = vmatpush.msra.mxu0 0.0
    %176 = vmatpush.msra.mxu0 0.0
    %177 = vmatpush.msra.mxu0 0.0
    %178 = vmatpush.msra.mxu0 0.0
    %179 = vmatpush.msra.mxu0 0.0
    %180 = vmatpush.msra.mxu0 0.0
    %181 = vmatpush.msra.mxu0 0.0
    %182 = vmatpush.msra.mxu0 0.0
    %183 = vmatpush.msra.mxu0 0.0
    %184 = vmatpush.msra.mxu0 0.0
    %185 = vmatpush.msra.mxu0 0.0
    %186 = vmatpush.msra.mxu0 0.0
    %187 = vmatpush.msra.mxu0 0.0
    %188 = vmatpush.msra.mxu0 0.0
    %189 = vmatpush.msra.mxu0 0.0
    %190 = vmatpush.msra.mxu0 %v162
    %191 = vmatmul.f32.gmra.mxu0 %v173
    %v192 = vpop.f32.mrf.mxu0
    %v193 = vadd.f32 0.0, %v192
    %194 = vdwg.mxu0
    %vm195 = vcmask 254976
    %196 = vst.msk [vmem:[%s4] sm:$0x3] %vm195, %v193
    // Predicated region
    $region26: #{manager_state_tracker.1} parent=1 // pred_check
      _
    $region27: #{manager_state_tracker.1} parent=1 // pred_check_branch
      %198 = sbr.rel (0) target = $region29
    $region28: #{manager_state_tracker.1} parent=1 // pred_region
      _
    $region29: #{manager_state_tracker.1} parent=1 // pred_fallthru
      _
    // Predicated region
    $region30: #{manager_state_tracker.1} parent=1 // pred_check
      _
    $region31: #{manager_state_tracker.1} parent=1 // pred_check_branch
      %200 = sbr.rel (0) target = $region33
    $region32: #{manager_state_tracker.1} parent=1 // pred_region
      _
    $region33: #{manager_state_tracker.1} parent=1 // pred_fallthru
      _
    %201 = vsyncpa [#allocation3], 1
    %202 = vsyncpa [#allocation5], 1

</llo_original>
